<compile_context>
chip_gen: v6e
topology: v6e:2x2x1
jax: 0.10.0
libtpu: 0.0.40
codegen_flags: <defaults>
</compile_context>

<pallas_src>
import functools
import math

import jax
import jax.numpy as jnp
from jax.experimental import pallas as pl
from jax.experimental.pallas import tpu as pltpu


def _layernorm_kernel(x_ref, w_ref, b_ref, o_ref, *, eps, inv_d):
    x = x_ref[...].astype(jnp.float32)                         # (tm, D)
    s = jnp.sum(x, axis=-1, keepdims=True)                     # (tm, 1)
    sq = jnp.sum(x * x, axis=-1, keepdims=True)                # (tm, 1)
    mean = s * inv_d
    var = jnp.maximum(sq * inv_d - mean * mean, 0.0)           # biased variance
    inv_std = 1.0 / (jnp.sqrt(var) + eps)                      # eps on std (torch .std()+eps)
    w = w_ref[...].astype(jnp.float32)                         # (1, D)
    b = b_ref[...].astype(jnp.float32)                         # (1, D)
    o_ref[...] = ((x - mean) * inv_std * w + b).astype(o_ref.dtype)


def _round_up(x: int, m: int) -> int:
    return ((x + m - 1) // m) * m


def _sublane_multiple(itemsize: int) -> int:
    # Packed dtypes put 2 (bf16) / 4 (i8, fp8) rows per sublane.
    return max(8, 32 // itemsize)


def _pick_row_tile(rows: int, d_model: int, itemsize: int):
    """Choose a row tile sized against the per-generation VMEM budget."""
    vmem_phys = 64 * 1024 * 1024          # conservative default = v7x per-TC
    try:
        info = pltpu.get_tpu_info()
        vmem_phys = int(getattr(info, "vmem_capacity_bytes", vmem_phys))
    except Exception:
        pass

    sub = _sublane_multiple(itemsize)

    # ~2 MiB tiles on 64 MiB parts (v7x), ~4 MiB on 128 MiB parts (v5e/v6e).
    # Streaming kernels hit ~85% of HBM roofline already at ~512-row tiles;
    # bigger tiles only burn VMEM headroom.
    tile_budget = (2 << 20) if vmem_phys <= (64 << 20) else (4 << 20)
    tm = max(sub, (tile_budget // max(1, d_model * itemsize)) // sub * sub)
    tm = min(tm, 512)

    # Keep the grid >= ~4 steps when there is enough work, so both v7x
    # TensorCores get rows and the DMA/compute pipeline actually overlaps.
    if rows >= 4 * sub:
        tm = min(tm, _round_up(pl.cdiv(rows, 4), sub))
    tm = min(tm, _round_up(rows, sub))
    tm = max(tm, sub)

    tile_in = tm * d_model * itemsize
    f32_tile = tm * d_model * 4
    # 2 input + 2 output pipeline buffers + ~3 fp32 tile-sized temporaries
    # (upcast / squares / result) + resident weight & bias + slack.
    needed = 4 * tile_in + 3 * f32_tile + 4 * d_model * 4 + (2 << 20)
    vmem_limit = int(min(max(needed, 32 << 20), int(vmem_phys * 0.8)))
    return tm, vmem_limit


def layer_norm(x, weight, bias, eps: float = 1e-5, row_tile: int | None = None):
    """x: (..., d_model); weight, bias: (d_model,). Normalizes over the last axis."""
    orig_shape = x.shape
    d_model = orig_shape[-1]
    rows = int(math.prod(orig_shape[:-1])) if len(orig_shape) > 1 else 1
    x2 = x.reshape(rows, d_model)

    itemsize = jnp.dtype(x.dtype).itemsize
    if row_tile is None:
        tm, vmem_limit = _pick_row_tile(rows, d_model, itemsize)
    else:
        sub = _sublane_multiple(itemsize)
        tm = max(sub, (int(row_tile) // sub) * sub)
        tm = min(tm, _round_up(rows, sub))
        needed = 4 * tm * d_model * itemsize + 3 * tm * d_model * 4 + (2 << 20)
        vmem_limit = int(max(needed, 32 << 20))

    # Ragged last block is handled by Pallas (out-of-bounds stores are masked);
    # rows are independent so no wrapper-side padding / slicing is needed.
    grid = (pl.cdiv(rows, tm),)

    w2 = weight.reshape(1, d_model)
    b2 = bias.reshape(1, d_model)

    kernel = functools.partial(_layernorm_kernel, eps=eps, inv_d=1.0 / d_model)

    out = pl.pallas_call(
        kernel,
        out_shape=jax.ShapeDtypeStruct((rows, d_model), x.dtype),
        grid_spec=pltpu.PrefetchScalarGridSpec(
            num_scalar_prefetch=0,
            grid=grid,
            in_specs=[
                pl.BlockSpec((tm, d_model), lambda i: (i, 0)),
                # weight/bias: constant index_map -> resident, no re-DMA per step
                pl.BlockSpec((1, d_model), lambda i: (0, 0)),
                pl.BlockSpec((1, d_model), lambda i: (0, 0)),
            ],
            out_specs=pl.BlockSpec((tm, d_model), lambda i: (i, 0)),
        ),
        compiler_params=pltpu.CompilerParams(
            dimension_semantics=("parallel",),
            vmem_limit_bytes=vmem_limit,
        ),
    )(x2, w2, b2)

    return out.reshape(orig_shape)


if __name__ == "__main__":
    key = jax.random.PRNGKey(0)
    batch, seq, d_model = 2, 8, 32

    # deterministic parameter init matching nn.Parameter(torch.ones/zeros)
    weight = jnp.ones((d_model,), dtype=jnp.float32)
    bias = jnp.zeros((d_model,), dtype=jnp.float32)

    x = jax.random.normal(key, (batch, seq, d_model), dtype=jnp.float32)

    y = layer_norm(x, weight, bias, eps=1e-5)
    y = jax.block_until_ready(y)

    # reference check in plain JAX (same semantics as the torch module)
    mean = jnp.mean(x, axis=-1, keepdims=True)
    std = jnp.sqrt(jnp.mean((x - mean) ** 2, axis=-1, keepdims=True)) + 1e-5
    ref = weight * ((x - mean) / std) + bias
    assert jnp.allclose(y, ref, atol=1e-5, rtol=1e-5), "mismatch vs reference"

    # exercise the multi-tile + ragged-last-block path (111 rows, tile 32 -> grid 4)
    x_big = jax.random.normal(jax.random.PRNGKey(1), (3, 37, d_model), dtype=jnp.float32)
    y_big = jax.block_until_ready(layer_norm(x_big, weight, bias, eps=1e-5))
    mean_b = jnp.mean(x_big, axis=-1, keepdims=True)
    std_b = jnp.sqrt(jnp.mean((x_big - mean_b) ** 2, axis=-1, keepdims=True)) + 1e-5
    ref_b = weight * ((x_big - mean_b) / std_b) + bias
    assert jnp.allclose(y_big, ref_b, atol=1e-5, rtol=1e-5), "mismatch vs reference (ragged path)"

    print("KERNEL_OK")
</pallas_src>

<mosaic_0001>
module attributes {stable_mosaic.version = 11 : i64} {
  func.func @_layernorm_kernel(%arg0: i32, %arg1: memref<16x32xf32, #tpu.memory_space<vmem>>, %arg2: memref<1x32xf32, #tpu.memory_space<vmem>>, %arg3: memref<1x32xf32, #tpu.memory_space<vmem>>, %arg4: memref<16x32xf32, #tpu.memory_space<vmem>>) attributes {dimension_semantics = [#tpu.dimension_semantics<parallel>], iteration_bounds = array<i64: 1>, scalar_prefetch = 0 : i64, scratch_operands = 0 : i64, tpu.core_type = #tpu.core_type<tc>, window_params = [{transform_indices = @transform_0, window_bounds = array<i64: 16, 32>}, {pipeline_mode = #tpu.pipeline_mode<synchronous>, transform_indices = @transform_1, window_bounds = array<i64: 1, 32>}, {pipeline_mode = #tpu.pipeline_mode<synchronous>, transform_indices = @transform_2, window_bounds = array<i64: 1, 32>}, {transform_indices = @transform_3, window_bounds = array<i64: 16, 32>}]} {
    %c0 = arith.constant 0 : index
    %c0_0 = arith.constant 0 : index
    %0 = vector.load %arg1[%c0, %c0_0] : memref<16x32xf32, #tpu.memory_space<vmem>>, vector<16x32xf32>
    %cst = arith.constant dense<0.000000e+00> : vector<16xf32>
    %1 = vector.multi_reduction <add>, %0, %cst [1] : vector<16x32xf32> to vector<16xf32>
    %2 = vector.shape_cast %1 : vector<16xf32> to vector<16x1xf32>
    %3 = arith.mulf %0, %0 : vector<16x32xf32>
    %cst_1 = arith.constant dense<0.000000e+00> : vector<16xf32>
    %4 = vector.multi_reduction <add>, %3, %cst_1 [1] : vector<16x32xf32> to vector<16xf32>
    %5 = vector.shape_cast %4 : vector<16xf32> to vector<16x1xf32>
    %cst_2 = arith.constant 3.125000e-02 : f32
    %6 = vector.broadcast %cst_2 : f32 to vector<16x1xf32>
    %7 = arith.mulf %2, %6 : vector<16x1xf32>
    %cst_3 = arith.constant 3.125000e-02 : f32
    %8 = vector.broadcast %cst_3 : f32 to vector<16x1xf32>
    %9 = arith.mulf %5, %8 : vector<16x1xf32>
    %10 = arith.mulf %7, %7 : vector<16x1xf32>
    %11 = arith.subf %9, %10 : vector<16x1xf32>
    %cst_4 = arith.constant 0.000000e+00 : f32
    %12 = vector.broadcast %cst_4 : f32 to vector<16x1xf32>
    %13 = arith.maximumf %11, %12 : vector<16x1xf32>
    %14 = math.sqrt %13 : vector<16x1xf32>
    %cst_5 = arith.constant 9.99999974E-6 : f32
    %15 = vector.broadcast %cst_5 : f32 to vector<16x1xf32>
    %16 = arith.addf %14, %15 : vector<16x1xf32>
    %cst_6 = arith.constant 1.000000e+00 : f32
    %17 = vector.broadcast %cst_6 : f32 to vector<16x1xf32>
    %18 = arith.divf %17, %16 : vector<16x1xf32>
    %c0_7 = arith.constant 0 : index
    %c0_8 = arith.constant 0 : index
    %19 = vector.load %arg2[%c0_7, %c0_8] : memref<1x32xf32, #tpu.memory_space<vmem>>, vector<1x32xf32>
    %c0_9 = arith.constant 0 : index
    %c0_10 = arith.constant 0 : index
    %20 = vector.load %arg3[%c0_9, %c0_10] : memref<1x32xf32, #tpu.memory_space<vmem>>, vector<1x32xf32>
    %21 = vector.broadcast %7 : vector<16x1xf32> to vector<16x32xf32>
    %22 = arith.subf %0, %21 : vector<16x32xf32>
    %23 = vector.broadcast %18 : vector<16x1xf32> to vector<16x32xf32>
    %24 = arith.mulf %22, %23 : vector<16x32xf32>
    %25 = vector.broadcast %19 : vector<1x32xf32> to vector<16x32xf32>
    %26 = arith.mulf %24, %25 : vector<16x32xf32>
    %27 = vector.broadcast %20 : vector<1x32xf32> to vector<16x32xf32>
    %28 = arith.addf %26, %27 : vector<16x32xf32>
    %c0_11 = arith.constant 0 : index
    %c0_12 = arith.constant 0 : index
    %29 = vector.load %arg4[%c0_11, %c0_12] : memref<16x32xf32, #tpu.memory_space<vmem>>, vector<16x32xf32>
    tpu.vector_store %arg4[%c0_11, %c0_12], %28 {strides = array<i32>} : memref<16x32xf32, #tpu.memory_space<vmem>>, vector<16x32xf32>,
    return
  }
  func.func @transform_0(%arg0: i32) -> (i32, i32) {
    %c0_i32 = arith.constant 0 : i32
    %c0_i32_0 = arith.constant 0 : i32
    return %arg0, %c0_i32 : i32, i32
  }
  func.func @transform_1(%arg0: i32) -> (i32, i32) {
    %c0_i32 = arith.constant 0 : i32
    %c0_i32_0 = arith.constant 0 : i32
    %c0_i32_1 = arith.constant 0 : i32
    return %c0_i32, %c0_i32_0 : i32, i32
  }
  func.func @transform_2(%arg0: i32) -> (i32, i32) {
    %c0_i32 = arith.constant 0 : i32
    %c0_i32_0 = arith.constant 0 : i32
    %c0_i32_1 = arith.constant 0 : i32
    return %c0_i32, %c0_i32_0 : i32, i32
  }
  func.func @transform_3(%arg0: i32) -> (i32, i32) {
    %c0_i32 = arith.constant 0 : i32
    %c0_i32_0 = arith.constant 0 : i32
    return %arg0, %c0_i32 : i32, i32
  }
}

</mosaic_0001>

<llo_original>
// kernel: tpu_custom_call.1
$region0: #{tpu_custom_call.1}
  #allocation0 [shape = 'u32[]', space=smem, size = 0x4, offset = 0x4, fixed_abs, tag = 'smem constant byte address 0x4 - core index']
  #allocation1 [shape = 'u32[144,128]{1,0:T(1,128)}', space=vmem, size = 0x12000, scoped, tag = 'internal scratch']
  %s0 = inlined_call_operand.hbm [shape: f32[16,32], index: 0, kind: input, shape index: {}]
  %s1 = inlined_call_operand.vmem [shape: f32[1,32], index: 1, kind: input, shape index: {}]
  %s2 = inlined_call_operand.vmem [shape: f32[1,32], index: 2, kind: input, shape index: {}]
  %s3 = inlined_call_operand.hbm [shape: f32[16,32], index: 3, kind: output, shape index: {}]
  %s4 = sld [smem:[#allocation0]]
  $region26: #{tpu_custom_call.1} parent=0
    _
  %s6 = ssub.s32 1, %s4
  %s7 = scalar_select 0, %s6, %s4
  $region1: #{tpu_custom_call.1} parent=0
    #allocation2 [shape = 'u8[8192]{0}', space=vmem, size = 0x2000, scoped, tag = 'input window, operand 0, single buffered']
    #allocation3 [shape = 's32[1]{0}', space=sflag, size = 0x4, scoped, tag = 'scoped memory for tpu_custom_call.1']
    #allocation4 [shape = 's32[1]{0}', space=sflag, size = 0x4, scoped, tag = 'scoped memory for tpu_custom_call.1']
    #allocation5 [shape = 'u8[8192]{0}', space=vmem, size = 0x2000, scoped, tag = 'output window, operand 0, single buffered']
    %8 = vsyncpa [#allocation3], 0
    %9 = vsyncpa [#allocation4], 0
    // Predicated region
    $region2: #{tpu_custom_call.1} parent=1 // pred_check
      _
    $region3: #{tpu_custom_call.1} parent=1 // pred_check_branch
      %11 = sbr.rel (0) target = $region5
    $region4: #{tpu_custom_call.1} parent=1 // pred_region
      %s13 = ssub.s32 256, 256
      %14 = vsyncadd [#allocation3], %s13
      %s15 = sshll.u32 [#allocation2], 4
      %s16 = int_to_ptr.vmem [resolvable:$true] %s15
      %21 = dma.hbm_to_vmem [thread:$0]  %s0, 256, %s16, [#allocation3], 128, 128, 8
    $region5: #{tpu_custom_call.1} parent=1 // pred_fallthru
      _
    // Predicated region
    $region6: #{tpu_custom_call.1} parent=1 // pred_check
      _
    $region7: #{tpu_custom_call.1} parent=1 // pred_check_branch
      %23 = sbr.rel (0) target = $region9
    $region8: #{tpu_custom_call.1} parent=1 // pred_region
      _
    $region9: #{tpu_custom_call.1} parent=1 // pred_fallthru
      _
    // Predicated region
    $region10: #{tpu_custom_call.1} parent=1 // pred_check
      _
    $region11: #{tpu_custom_call.1} parent=1 // pred_check_branch
      %25 = sbr.rel (0) target = $region13
    $region12: #{tpu_custom_call.1} parent=1 // pred_region
      _
    $region13: #{tpu_custom_call.1} parent=1 // pred_fallthru
      _
    // Predicated region
    $region14: #{tpu_custom_call.1} parent=1 // pred_check
      _
    $region15: #{tpu_custom_call.1} parent=1 // pred_check_branch
      %27 = sbr.rel (0) target = $region17
    $region16: #{tpu_custom_call.1} parent=1 // pred_region
      %28 = dma.done [#allocation3], 256
    $region17: #{tpu_custom_call.1} parent=1 // pred_fallthru
      _
    %v29 = vld [vmem:[#allocation2] sm:$0xff]
    %v30 = vld [vmem:[#allocation2 + $0x8] sm:$0xff]
    %vm31 = vcmask 261120
    %v32 = vsel %vm31, %v29, 0.0
    %33 = vadd.xlane.f32.xlu0 %v32
    %v34 = vpop.xlane.xlu0 %33
    %v35 = vsel %vm31, %v30, 0.0
    %36 = vadd.xlane.f32.xlu0 %v35
    %v37 = vpop.xlane.xlu0 %36
    %v38 = vmul.f32 %v29, %v29
    %v39 = vmul.f32 %v30, %v30
    %v40 = vsel %vm31, %v38, 0.0
    %41 = vadd.xlane.f32.xlu0 %v40
    %v42 = vpop.xlane.xlu0 %41
    %v43 = vsel %vm31, %v39, 0.0
    %44 = vadd.xlane.f32.xlu0 %v43
    %v45 = vpop.xlane.xlu0 %44
    %v46 = vmul.f32 %v34, 0.03125
    %v47 = vmul.f32 %v37, 0.03125
    %v48 = vmul.f32 %v42, 0.03125
    %v49 = vmul.f32 %v45, 0.03125
    %v50 = vmul.f32 %v46, %v46
    %v51 = vmul.f32 %v47, %v47
    %v52 = vsub.f32 %v48, %v50
    %v53 = vsub.f32 %v49, %v51
    %v54 = vmax.f32 %v52, 0.0
    %v55 = vmax.f32 %v53, 0.0
    %v56 = vrsqrt.pop %v54
    %v57 = vmul.f32 %v54, %v56
    %vm58 = vcmp.eq.f32.partialorder %v54, inf
    %v59 = vsel %vm58, %v54, %v57
    %vm60 = vcmp.eq.f32.partialorder %v54, 0.0
    %v61 = vand.u32 %v54, 2147483648
    %v62 = vsel %vm60, %v61, %v59
    %v63 = vrsqrt.pop %v55
    %v64 = vmul.f32 %v55, %v63
    %vm65 = vcmp.eq.f32.partialorder %v55, inf
    %v66 = vsel %vm65, %v55, %v64
    %vm67 = vcmp.eq.f32.partialorder %v55, 0.0
    %v68 = vand.u32 %v55, 2147483648
    %v69 = vsel %vm67, %v68, %v66
    %v70 = vadd.f32 %v62, 1e-05
    %v71 = vadd.f32 %v69, 1e-05
    %v72 = vrcp.pop %v70
    %v73 = vmul.f32 1.0, %v72
    %v74 = vrcp.pop %v71
    %v75 = vmul.f32 1.0, %v74
    %v76 = vld [vmem:[%s1] sm:$0x1]
    %v77 = vld [vmem:[%s2] sm:$0x1]
    %v78 = vsub.f32 %v29, %v46
    %v79 = vsub.f32 %v30, %v47
    %v80 = vmul.f32 %v78, %v73
    %v81 = vmul.f32 %v79, %v75
    %v83 = vlaneseq
    %v84 = vshrl.u32 %v83, 7
    %v85 = vsub.s32 0, %v84
    %v86 = vrot.slane %v76, %v85
    %v88 = vmul.f32 %v80, %v86
    %v89 = vmul.f32 %v81, %v86
    %v91 = vlaneseq
    %v92 = vshrl.u32 %v91, 7
    %v93 = vsub.s32 0, %v92
    %v94 = vrot.slane %v77, %v93
    %v96 = vadd.f32 %v88, %v94
    %v97 = vadd.f32 %v89, %v94
    %98 = vst.msk [vmem:[#allocation5] sm:$0xff] %vm31, %v96
    %99 = vst.msk [vmem:[#allocation5 + $0x8] sm:$0xff] %vm31, %v97
    // Predicated region
    $region18: #{tpu_custom_call.1} parent=1 // pred_check
      _
    $region19: #{tpu_custom_call.1} parent=1 // pred_check_branch
      %101 = sbr.rel (0) target = $region21
    $region20: #{tpu_custom_call.1} parent=1 // pred_region
      %s103 = ssub.s32 256, 256
      %104 = vsyncadd [#allocation4], %s103
      %s105 = sshll.u32 [#allocation5], 4
      %s106 = int_to_ptr.vmem [resolvable:$true] %s105
      %111 = dma.vmem_to_hbm [thread:$0]  %s106, 256, %s3, [#allocation4], 128, 128, 8
    $region21: #{tpu_custom_call.1} parent=1 // pred_fallthru
      _
    // Predicated region
    $region22: #{tpu_custom_call.1} parent=1 // pred_check
      _
    $region23: #{tpu_custom_call.1} parent=1 // pred_check_branch
      %113 = sbr.rel (0) target = $region25
    $region24: #{tpu_custom_call.1} parent=1 // pred_region
      %114 = dma.done [#allocation4], 256
    $region25: #{tpu_custom_call.1} parent=1 // pred_fallthru
      _
    %115 = vsyncpa [#allocation3], 1
    %116 = vsyncpa [#allocation4], 1

</llo_original>
